<compile_context>
chip_gen: v6e
topology: v6e:2x2x1
jax: 0.10.0
libtpu: 0.0.40
codegen_flags: <defaults>
</compile_context>

<pallas_src>
import math

import jax
import jax.numpy as jnp
import numpy as np
from jax import lax
from jax.experimental import pallas as pl
from jax.experimental.pallas import tpu as pltpu

BN_EPS = 1e-5
# Explicit VMEM budget: above every generation's default scoped limit
# (16/32/32 MiB), below v7x's 64 MiB physical per-core VMEM.
_VMEM_LIMIT_BYTES = 48 * 1024 * 1024


def _maxpool3x3_same(h):
    """3x3 spatial max pool, stride 1, 'same' padding, on (H, W, C) float32.

    Input is post-ReLU (>= 0), so zero padding is exactly equivalent to
    PyTorch's implicit -inf padding.  W (sublane) shifts use pltpu.roll, which
    runs in the otherwise-idle XLU slot, with iota edge masks; H shifts are
    cheap row-offset maxima on the outer (non-vreg) axis."""
    H, W, C = h.shape
    if W > 1:
        w_idx = lax.broadcasted_iota(jnp.int32, (H, W, C), 1)
        from_left = jnp.where(w_idx >= 1, pltpu.roll(h, 1, axis=1), 0.0)
        from_right = jnp.where(w_idx < W - 1, pltpu.roll(h, W - 1, axis=1), 0.0)
        h = jnp.maximum(h, jnp.maximum(from_left, from_right))
    if H > 1:
        zrow = jnp.zeros((1, W, C), h.dtype)
        up = jnp.concatenate([zrow, h[:-1]], axis=0)
        down = jnp.concatenate([h[1:], zrow], axis=0)
        h = jnp.maximum(h, jnp.maximum(up, down))
    return h


def _make_block_kernel(*, k, stride, in_hw, out_hw, cin, cout, ctot, pad_left,
                       zero_pad, residual_mode, residual_scale):
    k0, k1, k2 = k
    s0, s1, s2 = stride
    H, W = in_hw
    H_out, W_out = out_hw
    K = k0 * k1 * k2 * cin

    def kernel(*refs):
        x_refs = refs[:k0]                       # k0 taps of (1,1,H,W,Cin)
        w_ref, so_ref, o_ref = refs[k0:]
        t = pl.program_id(1)

        # Full im2col: every (kt, kh, kw) tap concatenated on the channel axis,
        # contracted by ONE MXU matmul with depth K = k0*k1*k2*Cin.
        parts = []
        for kt in range(k0):
            xf = x_refs[kt][0, 0]                # (H, W, Cin)
            if zero_pad and kt < pad_left:
                # ZeroPad3D: taps left of frame 0 contribute 0.  (Replication
                # padding is already handled by the clamped index_map.)
                valid = (t * s0 + kt >= pad_left)
                xf = xf * valid.astype(xf.dtype)
            for kh in range(k1):
                for kw in range(k2):
                    parts.append(xf[kh:kh + (H_out - 1) * s1 + 1:s1,
                                    kw:kw + (W_out - 1) * s2 + 1:s2, :])
        patch = parts[0] if len(parts) == 1 else jnp.concatenate(parts, axis=-1)

        acc = jnp.dot(patch.reshape(H_out * W_out, K), w_ref[...],
                      preferred_element_type=jnp.float32)
        acc = acc.reshape(H_out, W_out, ctot)    # main conv [+ fused rproj]

        so = so_ref[...]                         # (2, Cout) packed scale/offset
        h = acc[..., :cout] * so[0] + so[1]      # fused conv-bias + BatchNorm
        h = jnp.maximum(h, 0.0)                  # ReLU
        h = _maxpool3x3_same(h)                  # MaxPool3d((1,3,3), 'same')
        if residual_mode == "proj":
            h = (h + acc[..., cout:]) * residual_scale
        elif residual_mode == "identity":
            # Identity residual == unpadded input frame t == the last temporal
            # tap's block (already resident in VMEM, no extra DMA).
            h = (h + x_refs[k0 - 1][0, 0].astype(jnp.float32)) * residual_scale
        o_ref[0, 0] = h.astype(o_ref.dtype)

    return kernel


def _conv3d_block(x, wmat, so, *, k, stride, zero_pad, residual_mode,
                  residual_scale, cout):
    """One fused layer. x: (N, T, H, W, Cin) channels-last (compute dtype).
    wmat: (k0*k1*k2*Cin, Ctot) im2col weight (Ctot = Cout, or 2*Cout with the
    rproj residual columns appended).  so: packed (2, Cout) f32 scale/offset.
    Returns (N, T_out, H_out, W_out, Cout) in x.dtype."""
    N, T, H, W, Cin = x.shape
    k0, k1, k2 = k
    s0, s1, s2 = stride
    Ctot = wmat.shape[1]

    pad_left = k0 - 1                                  # causal pad (ka + kb)
    T_out = (T + pad_left - k0) // s0 + 1
    H_out = (H - k1) // s1 + 1
    W_out = (W - k2) // s2 + 1
    K = k0 * k1 * k2 * Cin
    assert wmat.shape[0] == K

    if residual_mode == "identity":
        assert (T_out, H_out, W_out, cout) == (T, H, W, Cin) and s0 == 1, (
            "identity skip connection shape mismatch (as in the PyTorch module)")
    if residual_mode == "proj":
        assert Ctot == 2 * cout and pad_left == 0, (
            "fused rproj residual requires k[0] == 1 (shape-valid skip)")

    kernel = _make_block_kernel(
        k=k, stride=stride, in_hw=(H, W), out_hw=(H_out, W_out), cin=Cin,
        cout=cout, ctot=Ctot, pad_left=pad_left, zero_pad=zero_pad,
        residual_mode=residual_mode, residual_scale=residual_scale)

    in_specs = []
    args = []
    for kt in range(k0):
        # Causal left-pad folded into the index map: clamp to frame 0
        # (replication semantics; also keeps the DMA in bounds for the zero-pad
        # variant, whose contribution is masked inside the kernel).
        def x_index(n, t, kt=kt):
            return (n, jnp.maximum(t * s0 + kt - pad_left, 0), 0, 0, 0)
        in_specs.append(pl.BlockSpec((1, 1, H, W, Cin), x_index))
        args.append(x)
    # Whole weight / scale-offset resident across the entire grid (constant
    # block index -> no per-step re-DMA).
    in_specs.append(pl.BlockSpec((K, Ctot), lambda n, t: (0, 0)))
    args.append(wmat)
    in_specs.append(pl.BlockSpec((2, cout), lambda n, t: (0, 0)))
    args.append(so)

    return pl.pallas_call(
        kernel,
        out_shape=jax.ShapeDtypeStruct((N, T_out, H_out, W_out, cout), x.dtype),
        grid=(N, T_out),
        in_specs=in_specs,
        out_specs=pl.BlockSpec((1, 1, H_out, W_out, cout),
                               lambda n, t: (n, t, 0, 0, 0)),
        compiler_params=pltpu.CompilerParams(
            dimension_semantics=("parallel", "parallel"),
            vmem_limit_bytes=_VMEM_LIMIT_BYTES),
    )(*args)


def conv3d_aggregator_forward(x_ncthw, params, *, skip_connections,
                              residual_scale, zero_pad,
                              compute_dtype=jnp.bfloat16):
    """Conv3DAggegator forward. x_ncthw: (N, C, T, H, W) -> (N, C', T', H', W').

    compute_dtype is both the matmul-operand and the inter-layer storage dtype;
    accumulation, BN, ReLU, pooling and the residual add stay float32."""
    rscale = math.sqrt(residual_scale)
    # Single layout change (and single dtype cast) at the module boundary; all
    # layers stay channels-last and in compute_dtype.
    x = jnp.transpose(x_ncthw, (0, 2, 3, 4, 1)).astype(compute_dtype)  # NTHWC
    for p in params:
        k, stride = p["k"], p["stride"]
        k0, k1, k2 = k
        cout, cin = p["w"].shape[0], p["w"].shape[1]

        # Fold conv bias + (inference) BatchNorm3d into one (2, Cout) operand.
        # TODO(synk): BatchNorm3d training-mode batch statistics are not
        # computed; running statistics (eval mode) are used.
        scale = p["bn_gamma"] / jnp.sqrt(p["bn_var"] + BN_EPS)
        bias = p["bias"] if p["bias"] is not None else 0.0
        offset = (bias - p["bn_mean"]) * scale + p["bn_beta"]
        so = jnp.stack([scale, offset]).astype(jnp.float32)          # (2, Cout)

        # Host-side (free) weight reshape to the im2col matrix, K-order
        # (kt, kh, kw, cin) matching the in-kernel patch concatenation.
        wmat = jnp.transpose(p["w"], (2, 3, 4, 1, 0)).reshape(
            k0 * k1 * k2 * cin, cout)

        residual_mode = "none"
        if skip_connections:
            if p.get("rproj_w") is not None:
                # Fuse the residual projection conv into the same matmul by
                # appending its columns (same k/stride, same input frames).
                assert k0 == 1, ("rproj skip connection requires k[0] == 1 for "
                                 "a shape-valid residual (as in PyTorch)")
                rmat = jnp.transpose(p["rproj_w"], (2, 3, 4, 1, 0)).reshape(
                    k0 * k1 * k2 * cin, cout)
                wmat = jnp.concatenate([wmat, rmat], axis=1)         # (K, 2*Cout)
                residual_mode = "proj"
            else:
                residual_mode = "identity"

        x = _conv3d_block(
            x, wmat.astype(compute_dtype), so, k=k, stride=stride,
            zero_pad=zero_pad, residual_mode=residual_mode,
            residual_scale=rscale, cout=cout)
    return jnp.transpose(x, (0, 4, 1, 2, 3)).astype(jnp.float32)      # NCTHW


def conv3d_aggregator_reference(x, params, *, skip_connections, residual_scale,
                                zero_pad):
    """Pure-JAX reference mirroring the PyTorch forward (BatchNorm eval mode)."""
    rscale = math.sqrt(residual_scale)
    dn = ("NCDHW", "OIDHW", "NCDHW")
    for p in params:
        k, stride = p["k"], p["stride"]
        residual = x
        pad = k[0] - 1
        if pad > 0:
            mode = "constant" if zero_pad else "edge"
            xp = jnp.pad(x, ((0, 0), (0, 0), (pad, 0), (0, 0), (0, 0)), mode=mode)
        else:
            xp = x
        h = lax.conv_general_dilated(xp, p["w"], stride, "VALID",
                                     dimension_numbers=dn)
        if p["bias"] is not None:
            h = h + p["bias"][None, :, None, None, None]
        bc = lambda v: v[None, :, None, None, None]
        h = (h - bc(p["bn_mean"])) / jnp.sqrt(bc(p["bn_var"]) + BN_EPS)
        h = h * bc(p["bn_gamma"]) + bc(p["bn_beta"])
        h = jnp.maximum(h, 0.0)
        h = lax.reduce_window(h, -jnp.inf, lax.max, (1, 1, 1, 3, 3),
                              (1, 1, 1, 1, 1),
                              [(0, 0), (0, 0), (0, 0), (1, 1), (1, 1)])
        if skip_connections:
            if p.get("rproj_w") is not None:
                residual = lax.conv_general_dilated(residual, p["rproj_w"],
                                                    stride, "VALID",
                                                    dimension_numbers=dn)
            h = (h + residual) * rscale
        x = h
    return x


def make_layer_params(key, in_d, dim, k, stride, conv_bias, make_rproj):
    ks = jax.random.split(key, 7)
    wstd = 1.0 / math.sqrt(in_d * k[0] * k[1] * k[2])
    return {
        "k": k, "stride": stride,
        "w": wstd * jax.random.normal(ks[0], (dim, in_d) + tuple(k), jnp.float32),
        "bias": (0.1 * jax.random.normal(ks[1], (dim,), jnp.float32))
                if conv_bias else None,
        "bn_gamma": 1.0 + 0.1 * jax.random.normal(ks[2], (dim,), jnp.float32),
        "bn_beta": 0.1 * jax.random.normal(ks[3], (dim,), jnp.float32),
        "bn_mean": 0.1 * jax.random.normal(ks[4], (dim,), jnp.float32),
        "bn_var": jnp.abs(1.0 + 0.1 * jax.random.normal(ks[5], (dim,), jnp.float32)),
        "rproj_w": (wstd * jax.random.normal(ks[6], (dim, in_d) + tuple(k),
                                             jnp.float32)) if make_rproj else None,
    }


if __name__ == "__main__":
    key = jax.random.PRNGKey(0)
    kx, kp = jax.random.split(key, 2)

    # Small, module-consistent config (chosen so the skip connections are
    # shape-valid, exactly as the PyTorch module requires):
    #   layer 1: 16 -> 32 channels, k=(1,3,3)  (exercises the fused Conv3d rproj)
    #   layer 2: 32 -> 32 channels, k=(3,1,1)  (exercises the causal T padding
    #                                           and the identity residual)
    N, embed, T, H, W = 2, 16, 8, 10, 10
    conv_layers = [(32, (1, 3, 3), (1, 1, 1)),
                   (32, (3, 1, 1), (1, 1, 1))]
    skip_connections = True
    residual_scale = 0.5
    conv_bias = True

    x = jax.random.normal(kx, (N, embed, T, H, W), jnp.float32)

    params = []
    in_d = embed
    for (dim, k, stride), lk in zip(conv_layers,
                                    jax.random.split(kp, len(conv_layers))):
        make_rproj = skip_connections and (in_d != dim)
        params.append(make_layer_params(lk, in_d, dim, k, stride, conv_bias,
                                        make_rproj))
        in_d = dim

    # Exercise both padding modes (ReplicationPad3D and ZeroPad3D), f32 path.
    refs = {}
    for zero_pad in (False, True):
        y = jax.block_until_ready(conv3d_aggregator_forward(
            x, params, skip_connections=skip_connections,
            residual_scale=residual_scale, zero_pad=zero_pad,
            compute_dtype=jnp.float32))
        y_ref = conv3d_aggregator_reference(
            x, params, skip_connections=skip_connections,
            residual_scale=residual_scale, zero_pad=zero_pad)
        refs[zero_pad] = y_ref
        assert y.shape == y_ref.shape
        np.testing.assert_allclose(np.asarray(y), np.asarray(y_ref),
                                   rtol=1e-4, atol=1e-4)

    # Performance path: bf16 matmul operands AND bf16 inter-layer activations;
    # f32 MXU accumulation / BN / ReLU / pool / residual add.
    y_bf16 = jax.block_until_ready(conv3d_aggregator_forward(
        x, params, skip_connections=skip_connections,
        residual_scale=residual_scale, zero_pad=False,
        compute_dtype=jnp.bfloat16))
    np.testing.assert_allclose(np.asarray(y_bf16), np.asarray(refs[False]),
                               rtol=2e-1, atol=2e-1)

    print("KERNEL_OK")
</pallas_src>

<mosaic_0001>
module attributes {stable_mosaic.version = 11 : i64} {
  func.func @kernel(%arg0: i32, %arg1: i32, %arg2: memref<1x1x10x10x16xf32, #tpu.memory_space<vmem>>, %arg3: memref<144x64xf32, #tpu.memory_space<vmem>>, %arg4: memref<2x32xf32, #tpu.memory_space<vmem>>, %arg5: memref<1x1x8x8x32xf32, #tpu.memory_space<vmem>>) attributes {dimension_semantics = [#tpu.dimension_semantics<parallel>, #tpu.dimension_semantics<parallel>], iteration_bounds = array<i64: 2, 8>, scalar_prefetch = 0 : i64, scratch_operands = 0 : i64, tpu.core_type = #tpu.core_type<tc>, window_params = [{transform_indices = @transform_0, window_bounds = array<i64: 1, 1, 10, 10, 16>}, {pipeline_mode = #tpu.pipeline_mode<synchronous>, transform_indices = @transform_1, window_bounds = array<i64: 144, 64>}, {pipeline_mode = #tpu.pipeline_mode<synchronous>, transform_indices = @transform_2, window_bounds = array<i64: 2, 32>}, {transform_indices = @transform_3, window_bounds = array<i64: 1, 1, 8, 8, 32>}]} {
    %c0 = arith.constant 0 : index
    %c0_0 = arith.constant 0 : index
    %c0_1 = arith.constant 0 : index
    %c0_2 = arith.constant 0 : index
    %c0_3 = arith.constant 0 : index
    %0 = vector.load %arg2[%c0, %c0_0, %c0_1, %c0_2, %c0_3] : memref<1x1x10x10x16xf32, #tpu.memory_space<vmem>>, vector<1x1x10x10x16xf32>
    %1 = vector.shape_cast %0 : vector<1x1x10x10x16xf32> to vector<10x10x16xf32>
    %2 = vector.extract_strided_slice %1 {offsets = [0, 0, 0], sizes = [8, 8, 16], strides = [1, 1, 1]} : vector<10x10x16xf32> to vector<8x8x16xf32>
    %3 = vector.extract_strided_slice %1 {offsets = [0, 1, 0], sizes = [8, 8, 16], strides = [1, 1, 1]} : vector<10x10x16xf32> to vector<8x8x16xf32>
    %4 = vector.extract_strided_slice %1 {offsets = [0, 2, 0], sizes = [8, 8, 16], strides = [1, 1, 1]} : vector<10x10x16xf32> to vector<8x8x16xf32>
    %5 = vector.extract_strided_slice %1 {offsets = [1, 0, 0], sizes = [8, 8, 16], strides = [1, 1, 1]} : vector<10x10x16xf32> to vector<8x8x16xf32>
    %6 = vector.extract_strided_slice %1 {offsets = [1, 1, 0], sizes = [8, 8, 16], strides = [1, 1, 1]} : vector<10x10x16xf32> to vector<8x8x16xf32>
    %7 = vector.extract_strided_slice %1 {offsets = [1, 2, 0], sizes = [8, 8, 16], strides = [1, 1, 1]} : vector<10x10x16xf32> to vector<8x8x16xf32>
    %8 = vector.extract_strided_slice %1 {offsets = [2, 0, 0], sizes = [8, 8, 16], strides = [1, 1, 1]} : vector<10x10x16xf32> to vector<8x8x16xf32>
    %9 = vector.extract_strided_slice %1 {offsets = [2, 1, 0], sizes = [8, 8, 16], strides = [1, 1, 1]} : vector<10x10x16xf32> to vector<8x8x16xf32>
    %10 = vector.extract_strided_slice %1 {offsets = [2, 2, 0], sizes = [8, 8, 16], strides = [1, 1, 1]} : vector<10x10x16xf32> to vector<8x8x16xf32>
    %11 = tpu.concatenate %2, %3, %4, %5, %6, %7, %8, %9, %10 in 2 : vector<8x8x16xf32>, vector<8x8x16xf32>, vector<8x8x16xf32>, vector<8x8x16xf32>, vector<8x8x16xf32>, vector<8x8x16xf32>, vector<8x8x16xf32>, vector<8x8x16xf32>, vector<8x8x16xf32> -> vector<8x8x144xf32>
    %12 = vector.shape_cast %11 : vector<8x8x144xf32> to vector<64x144xf32>
    %c0_4 = arith.constant 0 : index
    %c0_5 = arith.constant 0 : index
    %13 = vector.load %arg3[%c0_4, %c0_5] : memref<144x64xf32, #tpu.memory_space<vmem>>, vector<144x64xf32>
    %cst = arith.constant dense<0.000000e+00> : vector<64x64xf32>
    %14 = tpu.matmul %12, %13, %cst {dimension_numbers = #tpu.dot_dimension_numbers<[1], [0], [0], [1], [0, 0, 1, 1], [], []>} : vector<64x144xf32>, vector<144x64xf32>, vector<64x64xf32> -> vector<64x64xf32>
    %15 = vector.shape_cast %14 : vector<64x64xf32> to vector<8x8x64xf32>
    %c0_6 = arith.constant 0 : index
    %c0_7 = arith.constant 0 : index
    %16 = vector.load %arg4[%c0_6, %c0_7] : memref<2x32xf32, #tpu.memory_space<vmem>>, vector<2x32xf32>
    %17 = vector.extract_strided_slice %15 {offsets = [0, 0, 0], sizes = [8, 8, 32], strides = [1, 1, 1]} : vector<8x8x64xf32> to vector<8x8x32xf32>
    %18 = vector.extract_strided_slice %16 {offsets = [0, 0], sizes = [1, 32], strides = [1, 1]} : vector<2x32xf32> to vector<1x32xf32>
    %19 = vector.shape_cast %18 : vector<1x32xf32> to vector<32xf32>
    %20 = vector.shape_cast %19 : vector<32xf32> to vector<1x1x32xf32>
    %21 = vector.broadcast %20 : vector<1x1x32xf32> to vector<8x8x32xf32>
    %22 = arith.mulf %17, %21 : vector<8x8x32xf32>
    %23 = vector.extract_strided_slice %16 {offsets = [1, 0], sizes = [1, 32], strides = [1, 1]} : vector<2x32xf32> to vector<1x32xf32>
    %24 = vector.shape_cast %23 : vector<1x32xf32> to vector<32xf32>
    %25 = vector.shape_cast %24 : vector<32xf32> to vector<1x1x32xf32>
    %26 = vector.broadcast %25 : vector<1x1x32xf32> to vector<8x8x32xf32>
    %27 = arith.addf %22, %26 : vector<8x8x32xf32>
    %cst_8 = arith.constant 0.000000e+00 : f32
    %28 = vector.broadcast %cst_8 : f32 to vector<8x8x32xf32>
    %29 = arith.maximumf %27, %28 : vector<8x8x32xf32>
    %30 = tpu.iota {dimensions = array<i32: 1>} : vector<8x8x32xi32>
    %c1_i32 = arith.constant 1 : i32
    %31 = vector.broadcast %c1_i32 : i32 to vector<8x8x32xi32>
    %32 = arith.cmpi sge, %30, %31 : vector<8x8x32xi32>
    %c1_i32_9 = arith.constant 1 : i32
    %33 = tpu.dynamic_rotate %29 by %c1_i32_9 dim 1 : vector<8x8x32xf32>, i32 -> vector<8x8x32xf32>
    %cst_10 = arith.constant 0.000000e+00 : f32
    %34 = vector.broadcast %cst_10 : f32 to vector<8x8x32xf32>
    %35 = arith.select %32, %33, %34 : vector<8x8x32xi1>, vector<8x8x32xf32>
    %c7_i32 = arith.constant 7 : i32
    %36 = vector.broadcast %c7_i32 : i32 to vector<8x8x32xi32>
    %37 = arith.cmpi slt, %30, %36 : vector<8x8x32xi32>
    %c7_i32_11 = arith.constant 7 : i32
    %38 = tpu.dynamic_rotate %29 by %c7_i32_11 dim 1 : vector<8x8x32xf32>, i32 -> vector<8x8x32xf32>
    %cst_12 = arith.constant 0.000000e+00 : f32
    %39 = vector.broadcast %cst_12 : f32 to vector<8x8x32xf32>
    %40 = arith.select %37, %38, %39 : vector<8x8x32xi1>, vector<8x8x32xf32>
    %41 = arith.maximumf %35, %40 : vector<8x8x32xf32>
    %42 = arith.maximumf %29, %41 : vector<8x8x32xf32>
    %cst_13 = arith.constant 0.000000e+00 : f32
    %43 = vector.broadcast %cst_13 : f32 to vector<1x8x32xf32>
    %44 = vector.extract_strided_slice %42 {offsets = [0, 0, 0], sizes = [7, 8, 32], strides = [1, 1, 1]} : vector<8x8x32xf32> to vector<7x8x32xf32>
    %45 = tpu.concatenate %43, %44 in 0 : vector<1x8x32xf32>, vector<7x8x32xf32> -> vector<8x8x32xf32>
    %46 = vector.extract_strided_slice %42 {offsets = [1, 0, 0], sizes = [7, 8, 32], strides = [1, 1, 1]} : vector<8x8x32xf32> to vector<7x8x32xf32>
    %47 = tpu.concatenate %46, %43 in 0 : vector<7x8x32xf32>, vector<1x8x32xf32> -> vector<8x8x32xf32>
    %48 = arith.maximumf %45, %47 : vector<8x8x32xf32>
    %49 = arith.maximumf %42, %48 : vector<8x8x32xf32>
    %50 = vector.extract_strided_slice %15 {offsets = [0, 0, 32], sizes = [8, 8, 32], strides = [1, 1, 1]} : vector<8x8x64xf32> to vector<8x8x32xf32>
    %51 = arith.addf %49, %50 : vector<8x8x32xf32>
    %cst_14 = arith.constant 0.707106769 : f32
    %52 = vector.broadcast %cst_14 : f32 to vector<8x8x32xf32>
    %53 = arith.mulf %51, %52 : vector<8x8x32xf32>
    %c0_15 = arith.constant 0 : index
    %c0_16 = arith.constant 0 : index
    %c0_17 = arith.constant 0 : index
    %c0_18 = arith.constant 0 : index
    %c0_19 = arith.constant 0 : index
    %54 = vector.load %arg5[%c0_15, %c0_16, %c0_17, %c0_18, %c0_19] : memref<1x1x8x8x32xf32, #tpu.memory_space<vmem>>, vector<1x1x8x8x32xf32>
    %55 = vector.shape_cast %54 : vector<1x1x8x8x32xf32> to vector<8x8x32xf32>
    %56 = vector.shape_cast %53 : vector<8x8x32xf32> to vector<1x1x8x8x32xf32>
    tpu.vector_store %arg5[%c0_15, %c0_16, %c0_17, %c0_18, %c0_19], %56 {strides = array<i32>} : memref<1x1x8x8x32xf32, #tpu.memory_space<vmem>>, vector<1x1x8x8x32xf32>,
    return
  }
  func.func @transform_0(%arg0: i32, %arg1: i32) -> (i32, i32, i32, i32, i32) {
    %c1_i32 = arith.constant 1 : i32
    %0 = arith.muli %arg1, %c1_i32 : i32
    %c0_i32 = arith.constant 0 : i32
    %1 = arith.addi %0, %c0_i32 : i32
    %c0_i32_0 = arith.constant 0 : i32
    %2 = arith.subi %1, %c0_i32_0 : i32
    %c0_i32_1 = arith.constant 0 : i32
    %3 = arith.maxsi %2, %c0_i32_1 : i32
    %c0_i32_2 = arith.constant 0 : i32
    %c0_i32_3 = arith.constant 0 : i32
    %c0_i32_4 = arith.constant 0 : i32
    %c0_i32_5 = arith.constant 0 : i32
    return %arg0, %3, %c0_i32_2, %c0_i32_3, %c0_i32_4 : i32, i32, i32, i32, i32
  }
  func.func @transform_1(%arg0: i32, %arg1: i32) -> (i32, i32) {
    %c0_i32 = arith.constant 0 : i32
    %c0_i32_0 = arith.constant 0 : i32
    %c0_i32_1 = arith.constant 0 : i32
    return %c0_i32, %c0_i32_0 : i32, i32
  }
  func.func @transform_2(%arg0: i32, %arg1: i32) -> (i32, i32) {
    %c0_i32 = arith.constant 0 : i32
    %c0_i32_0 = arith.constant 0 : i32
    %c0_i32_1 = arith.constant 0 : i32
    return %c0_i32, %c0_i32_0 : i32, i32
  }
  func.func @transform_3(%arg0: i32, %arg1: i32) -> (i32, i32, i32, i32, i32) {
    %c0_i32 = arith.constant 0 : i32
    %c0_i32_0 = arith.constant 0 : i32
    %c0_i32_1 = arith.constant 0 : i32
    %c0_i32_2 = arith.constant 0 : i32
    return %arg0, %arg1, %c0_i32, %c0_i32_0, %c0_i32_1 : i32, i32, i32, i32, i32
  }
}

</mosaic_0001>

<llo_original>
// kernel: tpu_custom_call.1
$region0: #{tpu_custom_call.1}
  #allocation0 [shape = 'u32[]', space=smem, size = 0x4, offset = 0x4, fixed_abs, tag = 'smem constant byte address 0x4 - core index']
  #allocation1 [shape = 'u32[144,128]{1,0:T(1,128)}', space=vmem, size = 0x12000, scoped, tag = 'internal scratch']
  %s0 = inlined_call_operand.vmem [shape: f32[2,8,10,10,16], index: 0, kind: input, shape index: {}]
  %s1 = inlined_call_operand.vmem [shape: f32[144,64], index: 1, kind: input, shape index: {}]
  %s2 = inlined_call_operand.vmem [shape: f32[2,32], index: 2, kind: input, shape index: {}]
  %s3 = inlined_call_operand.hbm [shape: f32[2,8,8,8,32], index: 3, kind: output, shape index: {}]
  %s4 = sld [smem:[#allocation0]]
  $region45: #{tpu_custom_call.1} parent=0
    _
  %s6 = ssub.s32 1, %s4
  %s7 = scalar_select 0, %s6, %s4
  $region1: #{tpu_custom_call.1} parent=0
    #allocation2 [shape = 'u8[65536]{0}', space=vmem, size = 0x10000, scoped, tag = 'output window, operand 0']
    #allocation3 [shape = 's32[2]{0}', space=sflag, size = 0x8, scoped, tag = 'scoped memory for tpu_custom_call.1']
    %8 = vsyncpa [#allocation3], 0
    %s9 = scalar_lea.sflag [#allocation3], 1
    %10 = vsyncpa %s9, 0
    loop: start=0, step=1, limit=18
    $region2: #{tpu_custom_call.1} parent=1 // loop_pre_header
      _
    $region3: #{tpu_custom_call.1} parent=1 // loop_header
      %s12 = sphi 0, %s16
      %p13 = scmp.ge.s32.totalorder %s12, 18
      %s19 = sphi 0, %s31
      %s20 = sphi 0, %s27
      %s21 = sphi 0, %s19
      %s22 = sphi 0, %s20
      %s23 = sphi 0, %s21
      %s24 = sphi 0, %s22
      %s40 = sphi 0, %s42
      %s43 = sphi 0, %s40
      %s44 = sphi 0, %s43
      %s60 = sphi 0, %s44
      %s64 = sphi 0, %s64
      %s66 = sphi 0, %s64
      %s67 = sphi 0, %s66
      %s81 = sphi 0, %s67
      %s85 = sphi 0, %s85
      %s87 = sphi 0, %s85
      %s88 = sphi 0, %s87
      %s102 = sphi 0, %s88
      %s110 = sphi 0, %s112
      %s113 = sphi 0, %s110
      %s114 = sphi 0, %s113
      %s130 = sphi 0, %s114
    $region4: #{tpu_custom_call.1} parent=1 // loop_header_branch
      %15 = sbr.rel (%p13) target = $region8
    $region5: #{tpu_custom_call.1} parent=1 // loop_body
      %s17 = ssub.s32 %s12, 1
      %s18 = ssub.s32 %s12, 2
      %s25 = sadd.s32 1, %s20
      %p26 = scmp.ge.s32.totalorder %s25, 8
      %s27 = scalar_select %p26, 0, %s25
      %s28 = sadd.s32 1, %s19
      %s29 = scalar_select %p26, %s28, %s19
      %p30 = scmp.ge.s32.totalorder %s29, 2
      %s31 = scalar_select %p30, 0, %s29
      %p32 = scmp.gt.s32.totalorder %s20, 0
      %s33 = scalar_select %p32, %s20, 0
      %p34 = scmp.gt.s32.totalorder %s27, 0
      %s35 = scalar_select %p34, %s27, 0
      %s36 = ssub.s32 %s19, %s31
      %s37 = ssub.s32 %s33, %s35
      %s38 = sor.u32 %s36, %s37
      %p39 = scmp.eq.s32.totalorder %s38, 0
      %s41 = sadd.s32 %s40, 1
      %s42 = scalar_select %p39, %s40, %s41
      %p45 = pneg %p39
      %p46 = scmp.eq.s32.totalorder %s12, 15
      %p47 = por %p45, %p46
      %p48 = scmp.ne.s32.totalorder %s40, %s43
      %p49 = scmp.eq.s32.totalorder %s12, 0
      %p50 = por %p48, %p49
      %p51 = scmp.ne.s32.totalorder %s40, %s43
      %p52 = scmp.eq.s32.totalorder %s17, 15
      %p53 = por %p51, %p52
      %p54 = scmp.ne.s32.totalorder %s43, %s44
      %p55 = scmp.eq.s32.totalorder %s17, 0
      %p56 = por %p54, %p55
      %p57 = scmp.ne.s32.totalorder %s43, %s44
      %p58 = scmp.eq.s32.totalorder %s18, 15
      %p59 = por %p57, %p58
      %p61 = scmp.ne.s32.totalorder %s44, %s60
      %p62 = scmp.eq.s32.totalorder %s18, 0
      %p63 = por %p61, %p62
      %s65 = sadd.s32 %s64, 1
      %p68 = scmp.eq.s32.totalorder %s12, 15
      %p69 = scmp.ne.s32.totalorder %s64, %s66
      %p70 = scmp.eq.s32.totalorder %s12, 0
      %p71 = por %p69, %p70
      %p72 = scmp.ne.s32.totalorder %s64, %s66
      %p73 = scmp.eq.s32.totalorder %s17, 15
      %p74 = por %p72, %p73
      %p75 = scmp.ne.s32.totalorder %s66, %s67
      %p76 = scmp.eq.s32.totalorder %s17, 0
      %p77 = por %p75, %p76
      %p78 = scmp.ne.s32.totalorder %s66, %s67
      %p79 = scmp.eq.s32.totalorder %s18, 15
      %p80 = por %p78, %p79
      %p82 = scmp.ne.s32.totalorder %s67, %s81
      %p83 = scmp.eq.s32.totalorder %s18, 0
      %p84 = por %p82, %p83
      %s86 = sadd.s32 %s85, 1
      %p89 = scmp.eq.s32.totalorder %s12, 15
      %p90 = scmp.ne.s32.totalorder %s85, %s87
      %p91 = scmp.eq.s32.totalorder %s12, 0
      %p92 = por %p90, %p91
      %p93 = scmp.ne.s32.totalorder %s85, %s87
      %p94 = scmp.eq.s32.totalorder %s17, 15
      %p95 = por %p93, %p94
      %p96 = scmp.ne.s32.totalorder %s87, %s88
      %p97 = scmp.eq.s32.totalorder %s17, 0
      %p98 = por %p96, %p97
      %p99 = scmp.ne.s32.totalorder %s87, %s88
      %p100 = scmp.eq.s32.totalorder %s18, 15
      %p101 = por %p99, %p100
      %p103 = scmp.ne.s32.totalorder %s88, %s102
      %p104 = scmp.eq.s32.totalorder %s18, 0
      %p105 = por %p103, %p104
      %s106 = ssub.s32 %s19, %s31
      %s107 = ssub.s32 %s20, %s27
      %s108 = sor.u32 %s106, %s107
      %p109 = scmp.eq.s32.totalorder %s108, 0
      %s111 = sadd.s32 %s110, 1
      %s112 = scalar_select %p109, %s110, %s111
      %p115 = pneg %p109
      %p116 = scmp.eq.s32.totalorder %s12, 15
      %p117 = por %p115, %p116
      %p118 = scmp.ne.s32.totalorder %s110, %s113
      %p119 = scmp.eq.s32.totalorder %s12, 0
      %p120 = por %p118, %p119
      %p121 = scmp.ne.s32.totalorder %s110, %s113
      %p122 = scmp.eq.s32.totalorder %s17, 15
      %p123 = por %p121, %p122
      %p124 = scmp.ne.s32.totalorder %s113, %s114
      %p125 = scmp.eq.s32.totalorder %s17, 0
      %p126 = por %p124, %p125
      %p127 = scmp.ne.s32.totalorder %s113, %s114
      %p128 = scmp.eq.s32.totalorder %s18, 15
      %p129 = por %p127, %p128
      %p131 = scmp.ne.s32.totalorder %s114, %s130
      %p132 = scmp.eq.s32.totalorder %s18, 0
      %p133 = por %p131, %p132
      %p134 = scmp.le.s32.totalorder 1, %s12
      %p135 = scmp.lt.s32.totalorder %s12, 17
      %p136 = pnand %p134, %p135
      %p137 = pneg %p136
      // Predicated region
      $region9: #{tpu_custom_call.1} parent=5 // pred_check
        _
      $region10: #{tpu_custom_call.1} parent=5 // pred_check_branch
        %139 = sbr.rel (%p136) target = $region12
      $region11: #{tpu_custom_call.1} parent=5 // pred_region
        %s140 = ssub.s32 %s12, 1
        // Predicated region
        $region13: #{tpu_custom_call.1} parent=11 // pred_check
          %p141 = pneg %p77
        $region14: #{tpu_custom_call.1} parent=11 // pred_check_branch
          %143 = sbr.rel (%p141) target = $region16
        $region15: #{tpu_custom_call.1} parent=11 // pred_region
          _
        $region16: #{tpu_custom_call.1} parent=11 // pred_fallthru
          _
        // Predicated region
        $region17: #{tpu_custom_call.1} parent=11 // pred_check
          %p144 = pneg %p98
        $region18: #{tpu_custom_call.1} parent=11 // pred_check_branch
          %146 = sbr.rel (%p144) target = $region20
        $region19: #{tpu_custom_call.1} parent=11 // pred_region
          _
        $region20: #{tpu_custom_call.1} parent=11 // pred_fallthru
          _
      $region12: #{tpu_custom_call.1} parent=5 // pred_fallthru
        _
      %p147 = scmp.lt.s32.totalorder %s12, 16
      // Predicated region
      $region21: #{tpu_custom_call.1} parent=5 // pred_check
        %p148 = pneg %p147
      $region22: #{tpu_custom_call.1} parent=5 // pred_check_branch
        %150 = sbr.rel (%p148) target = $region24
      $region23: #{tpu_custom_call.1} parent=5 // pred_region
        // Predicated region
        $region25: #{tpu_custom_call.1} parent=23 // pred_check
          %p151 = pneg %p50
        $region26: #{tpu_custom_call.1} parent=23 // pred_check_branch
          %153 = sbr.rel (%p151) target = $region28
        $region27: #{tpu_custom_call.1} parent=23 // pred_region
          %p154 = scmp.gt.s32.totalorder %s20, 0
          %s155 = scalar_select %p154, %s20, 0
          %p156 = scmp.lt.s32.totalorder %s19, 1
          %s157 = scalar_select %p156, %s19, 1
          %p158 = scmp.lt.s32.totalorder %s155, 7
          %s159 = scalar_select %p158, %s155, 7
          %s160 = smul.addr %s159, 20
          %s161 = smul.addr %s157, 160
          %s162 = sadd.s32 %s160, %s161
          %s163 = smul.addr %s162, 8
          %s164 = scalar_lea.vmem %s0, %s163
          %p165 = scmp.gt.s32.totalorder %s20, 0
          %s166 = scalar_select %p165, %s20, 0
        $region28: #{tpu_custom_call.1} parent=23 // pred_fallthru
          _
      $region24: #{tpu_custom_call.1} parent=5 // pred_fallthru
        _
      %p167 = scmp.le.s32.totalorder 1, %s12
      %p168 = scmp.lt.s32.totalorder %s12, 17
      %p169 = pnand %p167, %p168
      %p170 = pneg %p169
      // Predicated region
      $region29: #{tpu_custom_call.1} parent=5 // pred_check
        _
      $region30: #{tpu_custom_call.1} parent=5 // pred_check_branch
        %172 = sbr.rel (%p169) target = $region32
      $region31: #{tpu_custom_call.1} parent=5 // pred_region
        %s173 = ssub.s32 %s12, 1
        %p174 = scmp.gt.s32.totalorder %s22, 0
        %s175 = scalar_select %p174, %s22, 0
        %p176 = scmp.lt.s32.totalorder %s21, 1
        %s177 = scalar_select %p176, %s21, 1
        %p178 = scmp.lt.s32.totalorder %s175, 7
        %s179 = scalar_select %p178, %s175, 7
        %s180 = smul.addr %s179, 20
        %s181 = smul.addr %s177, 160
        %s182 = sadd.s32 %s180, %s181
        %s183 = smul.addr %s182, 8
        %s184 = scalar_lea.vmem %s0, %s183
        %p185 = pneg %p56
        %p186 = pneg %p53
        %p187 = pneg %p77
        %p188 = pneg %p74
        %p189 = pneg %p98
        %p190 = pneg %p95
        %p191 = pneg %p126
        %p192 = pneg %p123
        %s193 = sand.u32 %s113, 1
        %s194 = scalar_lea.sflag [#allocation3], %s193
        %s195 = sand.u32 %s113, 1
        %s196 = smul.addr %s195, 64
        %s197 = scalar_lea.vmem [#allocation2], %s196
        %p198 = scmp.gt.s32.totalorder %s22, 0
        %s199 = scalar_select %p198, %s22, 0
        %p200 = scmp.lt.s32.totalorder %s21, 1
        %s201 = scalar_select %p200, %s21, 1
        %p202 = scmp.lt.s32.totalorder %s199, 7
        %s203 = scalar_select %p202, %s199, 7
        %s204 = smul.addr %s203, 20
        %s205 = smul.addr %s201, 160
        %s206 = sadd.s32 %s204, %s205
        %s207 = smul.addr %s206, 8
        %s208 = scalar_lea.vmem %s0, %s207
        %p209 = scmp.gt.s32.totalorder %s22, 0
        %s210 = scalar_select %p209, %s22, 0
        %v211 = vld [vmem:[%s208] sm:$0xff]
        %v212 = vld [vmem:[%s208 + $0x8] sm:$0x3]
        %v213 = vld [vmem:[%s208 + $0x10] sm:$0xff]
        %v214 = vld [vmem:[%s208 + $0x18] sm:$0x3]
        %v215 = vld [vmem:[%s208 + $0x20] sm:$0xff]
        %v216 = vld [vmem:[%s208 + $0x28] sm:$0x3]
        %v217 = vld [vmem:[%s208 + $0x30] sm:$0xff]
        %v218 = vld [vmem:[%s208 + $0x38] sm:$0x3]
        %v219 = vld [vmem:[%s208 + $0x40] sm:$0xff]
        %v220 = vld [vmem:[%s208 + $0x48] sm:$0x3]
        %v221 = vld [vmem:[%s208 + $0x50] sm:$0xff]
        %v222 = vld [vmem:[%s208 + $0x58] sm:$0x3]
        %v223 = vld [vmem:[%s208 + $0x60] sm:$0xff]
        %v224 = vld [vmem:[%s208 + $0x68] sm:$0x3]
        %v225 = vld [vmem:[%s208 + $0x70] sm:$0xff]
        %v226 = vld [vmem:[%s208 + $0x78] sm:$0x3]
        %v227 = vld [vmem:[%s208 + $0x80] sm:$0xff]
        %v228 = vld [vmem:[%s208 + $0x88] sm:$0x3]
        %v229 = vld [vmem:[%s208 + $0x90] sm:$0xff]
        %v230 = vld [vmem:[%s208 + $0x98] sm:$0x3]
        %vm247 = vcmask 1046528
        %v248 = vrot.slane %v211, 1
        %v249 = vrot.slane %v212, 1
        %v250 = vsel %vm247, %v248, %v249
        %v251 = vrot.slane %v213, 1
        %v252 = vrot.slane %v214, 1
        %v253 = vsel %vm247, %v251, %v252
        %v254 = vrot.slane %v215, 1
        %v255 = vrot.slane %v216, 1
        %v256 = vsel %vm247, %v254, %v255
        %v257 = vrot.slane %v217, 1
        %v258 = vrot.slane %v218, 1
        %v259 = vsel %vm247, %v257, %v258
        %v260 = vrot.slane %v219, 1
        %v261 = vrot.slane %v220, 1
        %v262 = vsel %vm247, %v260, %v261
        %v263 = vrot.slane %v221, 1
        %v264 = vrot.slane %v222, 1
        %v265 = vsel %vm247, %v263, %v264
        %v266 = vrot.slane %v223, 1
        %v267 = vrot.slane %v224, 1
        %v268 = vsel %vm247, %v266, %v267
        %v269 = vrot.slane %v225, 1
        %v270 = vrot.slane %v226, 1
        %v271 = vsel %vm247, %v269, %v270
        %272 = vrot.lane.b32.xlu0 %v250, 16
        %v273 = vpop.permute.xlu0 %272
        %274 = vrot.lane.b32.xlu0 %v253, 16
        %v275 = vpop.permute.xlu0 %274
        %276 = vrot.lane.b32.xlu0 %v256, 16
        %v277 = vpop.permute.xlu0 %276
        %278 = vrot.lane.b32.xlu0 %v259, 16
        %v279 = vpop.permute.xlu0 %278
        %280 = vrot.lane.b32.xlu0 %v262, 16
        %v281 = vpop.permute.xlu0 %280
        %282 = vrot.lane.b32.xlu0 %v265, 16
        %v283 = vpop.permute.xlu0 %282
        %284 = vrot.lane.b32.xlu0 %v268, 16
        %v285 = vpop.permute.xlu0 %284
        %286 = vrot.lane.b32.xlu0 %v271, 16
        %v287 = vpop.permute.xlu0 %286
        %vm296 = vcmask 1045504
        %v297 = vrot.slane %v211, 2
        %v298 = vrot.slane %v212, 2
        %v299 = vsel %vm296, %v297, %v298
        %v300 = vrot.slane %v213, 2
        %v301 = vrot.slane %v214, 2
        %v302 = vsel %vm296, %v300, %v301
        %v303 = vrot.slane %v215, 2
        %v304 = vrot.slane %v216, 2
        %v305 = vsel %vm296, %v303, %v304
        %v306 = vrot.slane %v217, 2
        %v307 = vrot.slane %v218, 2
        %v308 = vsel %vm296, %v306, %v307
        %v309 = vrot.slane %v219, 2
        %v310 = vrot.slane %v220, 2
        %v311 = vsel %vm296, %v309, %v310
        %v312 = vrot.slane %v221, 2
        %v313 = vrot.slane %v222, 2
        %v314 = vsel %vm296, %v312, %v313
        %v315 = vrot.slane %v223, 2
        %v316 = vrot.slane %v224, 2
        %v317 = vsel %vm296, %v315, %v316
        %v318 = vrot.slane %v225, 2
        %v319 = vrot.slane %v226, 2
        %v320 = vsel %vm296, %v318, %v319
        %321 = vrot.lane.b32.xlu0 %v299, 32
        %v322 = vpop.permute.xlu0 %321
        %323 = vrot.lane.b32.xlu0 %v302, 32
        %v324 = vpop.permute.xlu0 %323
        %325 = vrot.lane.b32.xlu0 %v305, 32
        %v326 = vpop.permute.xlu0 %325
        %327 = vrot.lane.b32.xlu0 %v308, 32
        %v328 = vpop.permute.xlu0 %327
        %329 = vrot.lane.b32.xlu0 %v311, 32
        %v330 = vpop.permute.xlu0 %329
        %331 = vrot.lane.b32.xlu0 %v314, 32
        %v332 = vpop.permute.xlu0 %331
        %333 = vrot.lane.b32.xlu0 %v317, 32
        %v334 = vpop.permute.xlu0 %333
        %335 = vrot.lane.b32.xlu0 %v320, 32
        %v336 = vpop.permute.xlu0 %335
        %346 = vrot.lane.b32.xlu0 %v213, 48
        %v347 = vpop.permute.xlu0 %346
        %348 = vrot.lane.b32.xlu0 %v215, 48
        %v349 = vpop.permute.xlu0 %348
        %350 = vrot.lane.b32.xlu0 %v217, 48
        %v351 = vpop.permute.xlu0 %350
        %352 = vrot.lane.b32.xlu0 %v219, 48
        %v353 = vpop.permute.xlu0 %352
        %354 = vrot.lane.b32.xlu0 %v221, 48
        %v355 = vpop.permute.xlu0 %354
        %356 = vrot.lane.b32.xlu0 %v223, 48
        %v357 = vpop.permute.xlu0 %356
        %358 = vrot.lane.b32.xlu0 %v225, 48
        %v359 = vpop.permute.xlu0 %358
        %360 = vrot.lane.b32.xlu0 %v227, 48
        %v361 = vpop.permute.xlu0 %360
        %v371 = vrot.slane %v227, 1
        %v372 = vrot.slane %v228, 1
        %v373 = vsel %vm247, %v371, %v372
        %374 = vrot.lane.b32.xlu0 %v253, 64
        %v375 = vpop.permute.xlu0 %374
        %376 = vrot.lane.b32.xlu0 %v256, 64
        %v377 = vpop.permute.xlu0 %376
        %378 = vrot.lane.b32.xlu0 %v259, 64
        %v379 = vpop.permute.xlu0 %378
        %380 = vrot.lane.b32.xlu0 %v262, 64
        %v381 = vpop.permute.xlu0 %380
        %382 = vrot.lane.b32.xlu0 %v265, 64
        %v383 = vpop.permute.xlu0 %382
        %384 = vrot.lane.b32.xlu0 %v268, 64
        %v385 = vpop.permute.xlu0 %384
        %386 = vrot.lane.b32.xlu0 %v271, 64
        %v387 = vpop.permute.xlu0 %386
        %388 = vrot.lane.b32.xlu0 %v373, 64
        %v389 = vpop.permute.xlu0 %388
        %v398 = vrot.slane %v227, 2
        %v399 = vrot.slane %v228, 2
        %v400 = vsel %vm296, %v398, %v399
        %401 = vrot.lane.b32.xlu0 %v302, 80
        %v402 = vpop.permute.xlu0 %401
        %403 = vrot.lane.b32.xlu0 %v305, 80
        %v404 = vpop.permute.xlu0 %403
        %405 = vrot.lane.b32.xlu0 %v308, 80
        %v406 = vpop.permute.xlu0 %405
        %407 = vrot.lane.b32.xlu0 %v311, 80
        %v408 = vpop.permute.xlu0 %407
        %409 = vrot.lane.b32.xlu0 %v314, 80
        %v410 = vpop.permute.xlu0 %409
        %411 = vrot.lane.b32.xlu0 %v317, 80
        %v412 = vpop.permute.xlu0 %411
        %413 = vrot.lane.b32.xlu0 %v320, 80
        %v414 = vpop.permute.xlu0 %413
        %415 = vrot.lane.b32.xlu0 %v400, 80
        %v416 = vpop.permute.xlu0 %415
        %426 = vrot.lane.b32.xlu0 %v215, 96
        %v427 = vpop.permute.xlu0 %426
        %428 = vrot.lane.b32.xlu0 %v217, 96
        %v429 = vpop.permute.xlu0 %428
        %430 = vrot.lane.b32.xlu0 %v219, 96
        %v431 = vpop.permute.xlu0 %430
        %432 = vrot.lane.b32.xlu0 %v221, 96
        %v433 = vpop.permute.xlu0 %432
        %434 = vrot.lane.b32.xlu0 %v223, 96
        %v435 = vpop.permute.xlu0 %434
        %436 = vrot.lane.b32.xlu0 %v225, 96
        %v437 = vpop.permute.xlu0 %436
        %438 = vrot.lane.b32.xlu0 %v227, 96
        %v439 = vpop.permute.xlu0 %438
        %440 = vrot.lane.b32.xlu0 %v229, 96
        %v441 = vpop.permute.xlu0 %440
        %v451 = vrot.slane %v229, 1
        %v452 = vrot.slane %v230, 1
        %v453 = vsel %vm247, %v451, %v452
        %454 = vrot.lane.b32.xlu0 %v256, 112
        %v455 = vpop.permute.xlu0 %454
        %456 = vrot.lane.b32.xlu0 %v259, 112
        %v457 = vpop.permute.xlu0 %456
        %458 = vrot.lane.b32.xlu0 %v262, 112
        %v459 = vpop.permute.xlu0 %458
        %460 = vrot.lane.b32.xlu0 %v265, 112
        %v461 = vpop.permute.xlu0 %460
        %462 = vrot.lane.b32.xlu0 %v268, 112
        %v463 = vpop.permute.xlu0 %462
        %464 = vrot.lane.b32.xlu0 %v271, 112
        %v465 = vpop.permute.xlu0 %464
        %466 = vrot.lane.b32.xlu0 %v373, 112
        %v467 = vpop.permute.xlu0 %466
        %468 = vrot.lane.b32.xlu0 %v453, 112
        %v469 = vpop.permute.xlu0 %468
        %v478 = vrot.slane %v229, 2
        %v479 = vrot.slane %v230, 2
        %v480 = vsel %vm296, %v478, %v479
        %vm481 = vcmask 130048
        %v482 = vsel %vm481, %v211, %v273
        %v483 = vsel %vm481, %v213, %v275
        %v484 = vsel %vm481, %v215, %v277
        %v485 = vsel %vm481, %v217, %v279
        %v486 = vsel %vm481, %v219, %v281
        %v487 = vsel %vm481, %v221, %v283
        %v488 = vsel %vm481, %v223, %v285
        %v489 = vsel %vm481, %v225, %v287
        %vm490 = vcmask 261120
        %v491 = vsel %vm490, %v482, %v322
        %v492 = vsel %vm490, %v483, %v324
        %v493 = vsel %vm490, %v484, %v326
        %v494 = vsel %vm490, %v485, %v328
        %v495 = vsel %vm490, %v486, %v330
        %v496 = vsel %vm490, %v487, %v332
        %v497 = vsel %vm490, %v488, %v334
        %v498 = vsel %vm490, %v489, %v336
        %vm499 = vcmask 392192
        %v500 = vsel %vm499, %v491, %v347
        %v501 = vsel %vm499, %v492, %v349
        %v502 = vsel %vm499, %v493, %v351
        %v503 = vsel %vm499, %v494, %v353
        %v504 = vsel %vm499, %v495, %v355
        %v505 = vsel %vm499, %v496, %v357
        %v506 = vsel %vm499, %v497, %v359
        %v507 = vsel %vm499, %v498, %v361
        %vm508 = vcmask 523264
        %v509 = vsel %vm508, %v500, %v375
        %v510 = vsel %vm508, %v501, %v377
        %v511 = vsel %vm508, %v502, %v379
        %v512 = vsel %vm508, %v503, %v381
        %v513 = vsel %vm508, %v504, %v383
        %v514 = vsel %vm508, %v505, %v385
        %v515 = vsel %vm508, %v506, %v387
        %v516 = vsel %vm508, %v507, %v389
        %vm517 = vcmask 654336
        %v518 = vsel %vm517, %v509, %v402
        %v519 = vsel %vm517, %v510, %v404
        %v520 = vsel %vm517, %v511, %v406
        %v521 = vsel %vm517, %v512, %v408
        %v522 = vsel %vm517, %v513, %v410
        %v523 = vsel %vm517, %v514, %v412
        %v524 = vsel %vm517, %v515, %v414
        %v525 = vsel %vm517, %v516, %v416
        %vm526 = vcmask 785408
        %v527 = vsel %vm526, %v518, %v427
        %v528 = vsel %vm526, %v519, %v429
        %v529 = vsel %vm526, %v520, %v431
        %v530 = vsel %vm526, %v521, %v433
        %v531 = vsel %vm526, %v522, %v435
        %v532 = vsel %vm526, %v523, %v437
        %v533 = vsel %vm526, %v524, %v439
        %v534 = vsel %vm526, %v525, %v441
        %vm535 = vcmask 916480
        %v536 = vsel %vm535, %v527, %v455
        %v537 = vsel %vm535, %v528, %v457
        %v538 = vsel %vm535, %v529, %v459
        %v539 = vsel %vm535, %v530, %v461
        %v540 = vsel %vm535, %v531, %v463
        %v541 = vsel %vm535, %v532, %v465
        %v542 = vsel %vm535, %v533, %v467
        %v543 = vsel %vm535, %v534, %v469
        %v544 = vld [vmem:[%s1] sm:$0xff]
        %v545 = vld [vmem:[%s1 + $0x8] sm:$0xff]
        %v546 = vld [vmem:[%s1 + $0x10] sm:$0xff]
        %v547 = vld [vmem:[%s1 + $0x18] sm:$0xff]
        %v548 = vld [vmem:[%s1 + $0x20] sm:$0xff]
        %v549 = vld [vmem:[%s1 + $0x28] sm:$0xff]
        %v550 = vld [vmem:[%s1 + $0x30] sm:$0xff]
        %v551 = vld [vmem:[%s1 + $0x38] sm:$0xff]
        %v552 = vld [vmem:[%s1 + $0x40] sm:$0xff]
        %v553 = vld [vmem:[%s1 + $0x48] sm:$0xff]
        %v554 = vld [vmem:[%s1 + $0x50] sm:$0xff]
        %v555 = vld [vmem:[%s1 + $0x58] sm:$0xff]
        %v556 = vld [vmem:[%s1 + $0x60] sm:$0xff]
        %v557 = vld [vmem:[%s1 + $0x68] sm:$0xff]
        %v558 = vld [vmem:[%s1 + $0x70] sm:$0xff]
        %v559 = vld [vmem:[%s1 + $0x78] sm:$0xff]
        %v560 = vld [vmem:[%s1 + $0x80] sm:$0xff]
        %v561 = vld [vmem:[%s1 + $0x88] sm:$0xff]
        %v562 = vsel %vm481, %v305, 0
        %v564 = vsel %vm481, %v308, 0
        %v566 = vsel %vm481, %v311, 0
        %v568 = vsel %vm481, %v314, 0
        %v570 = vsel %vm481, %v317, 0
        %v572 = vsel %vm481, %v320, 0
        %v574 = vsel %vm481, %v400, 0
        %v576 = vsel %vm481, %v480, 0
        %578 = vmatprep.subr.mxu0 0.0
        %579 = vmatpush1.msra.mxu0 %v559
        %580 = vmatprep.subr.mxu0 0.0
        %581 = vmatpush1.msra.mxu0 %v558
        %582 = vmatprep.subr.mxu0 0.0
        %583 = vmatpush1.msra.mxu0 %v557
        %584 = vmatprep.subr.mxu0 0.0
        %585 = vmatpush1.msra.mxu0 %v556
        %586 = vmatprep.subr.mxu0 0.0
        %587 = vmatpush1.msra.mxu0 %v555
        %588 = vmatprep.subr.mxu0 0.0
        %589 = vmatpush1.msra.mxu0 %v554
        %590 = vmatprep.subr.mxu0 0.0
        %591 = vmatpush1.msra.mxu0 %v553
        %592 = vmatprep.subr.mxu0 0.0
        %593 = vmatpush1.msra.mxu0 %v552
        %594 = vmatprep.subr.mxu0 0.0
        %595 = vmatpush1.msra.mxu0 %v551
        %596 = vmatprep.subr.mxu0 0.0
        %597 = vmatpush1.msra.mxu0 %v550
        %598 = vmatprep.subr.mxu0 0.0
        %599 = vmatpush1.msra.mxu0 %v549
        %600 = vmatprep.subr.mxu0 0.0
        %601 = vmatpush1.msra.mxu0 %v548
        %602 = vmatprep.subr.mxu0 0.0
        %603 = vmatpush1.msra.mxu0 %v547
        %604 = vmatprep.subr.mxu0 0.0
        %605 = vmatpush1.msra.mxu0 %v546
        %606 = vmatprep.subr.mxu0 0.0
        %607 = vmatpush1.msra.mxu0 %v545
        %608 = vmatprep.subr.mxu0 0.0
        %609 = vmatpush1.msra.mxu0 %v544
        %610 = vmatprep.subr.mxu0 0.0
        %611 = vmatpush2.msra.mxu0 0.0
        %612 = vmatprep.subr.mxu0 0.0
        %613 = vmatpush2.msra.mxu0 0.0
        %614 = vmatprep.subr.mxu0 0.0
        %615 = vmatpush2.msra.mxu0 0.0
        %616 = vmatprep.subr.mxu0 0.0
        %617 = vmatpush2.msra.mxu0 0.0
        %618 = vmatprep.subr.mxu0 0.0
        %619 = vmatpush2.msra.mxu0 0.0
        %620 = vmatprep.subr.mxu0 0.0
        %621 = vmatpush2.msra.mxu0 0.0
        %622 = vmatprep.subr.mxu0 0.0
        %623 = vmatpush2.msra.mxu0 0.0
        %624 = vmatprep.subr.mxu0 0.0
        %625 = vmatpush2.msra.mxu0 0.0
        %626 = vmatprep.subr.mxu0 0.0
        %627 = vmatpush2.msra.mxu0 0.0
        %628 = vmatprep.subr.mxu0 0.0
        %629 = vmatpush2.msra.mxu0 0.0
        %630 = vmatprep.subr.mxu0 0.0
        %631 = vmatpush2.msra.mxu0 0.0
        %632 = vmatprep.subr.mxu0 0.0
        %633 = vmatpush2.msra.mxu0 0.0
        %634 = vmatprep.subr.mxu0 0.0
        %635 = vmatpush2.msra.mxu0 0.0
        %636 = vmatprep.subr.mxu0 0.0
        %637 = vmatpush2.msra.mxu0 0.0
        %638 = vmatprep.subr.mxu0 0.0
        %639 = vmatpush2.msra.mxu0 %v561
        %640 = vmatprep.subr.mxu0 0.0
        %641 = vmatpush2.msra.mxu0 %v560
        %642 = vmatprep.mubr.f32.mxu0 %v562
        %643 = vmatmul.mubr.f32.gmra.mxu0 %v536
        %v644 = vpop.f32.mrf.mxu0
        %v645 = vadd.f32 0.0, %v644
        %v646 = vpop.f32.mrf.mxu0
        %647 = vmatprep.mubr.f32.mxu0 %v564
        %648 = vmatmul.mubr.f32.gmra.mxu0 %v537
        %v649 = vpop.f32.mrf.mxu0
        %v650 = vadd.f32 0.0, %v649
        %v651 = vpop.f32.mrf.mxu0
        %652 = vmatprep.mubr.f32.mxu0 %v566
        %653 = vmatmul.mubr.f32.gmra.mxu0 %v538
        %v654 = vpop.f32.mrf.mxu0
        %v655 = vadd.f32 0.0, %v654
        %v656 = vpop.f32.mrf.mxu0
        %657 = vmatprep.mubr.f32.mxu0 %v568
        %658 = vmatmul.mubr.f32.gmra.mxu0 %v539
        %v659 = vpop.f32.mrf.mxu0
        %v660 = vadd.f32 0.0, %v659
        %v661 = vpop.f32.mrf.mxu0
        %662 = vmatprep.mubr.f32.mxu0 %v570
        %663 = vmatmul.mubr.f32.gmra.mxu0 %v540
        %v664 = vpop.f32.mrf.mxu0
        %v665 = vadd.f32 0.0, %v664
        %v666 = vpop.f32.mrf.mxu0
        %667 = vmatprep.mubr.f32.mxu0 %v572
        %668 = vmatmul.mubr.f32.gmra.mxu0 %v541
        %v669 = vpop.f32.mrf.mxu0
        %v670 = vadd.f32 0.0, %v669
        %v671 = vpop.f32.mrf.mxu0
        %672 = vmatprep.mubr.f32.mxu0 %v574
        %673 = vmatmul.mubr.f32.gmra.mxu0 %v542
        %v674 = vpop.f32.mrf.mxu0
        %v675 = vadd.f32 0.0, %v674
        %v676 = vpop.f32.mrf.mxu0
        %677 = vmatprep.mubr.f32.mxu0 %v576
        %678 = vmatmul.mubr.f32.gmra.mxu0 %v543
        %v679 = vpop.f32.mrf.mxu0
        %v680 = vadd.f32 0.0, %v679
        %v681 = vpop.f32.mrf.mxu0
        %682 = vdwg.mxu0
        %v683 = vld [vmem:[%s2] sm:$0x3]
        %v684 = vlaneseq
        %v685 = vshrl.u32 %v684, 7
        %v686 = vsub.s32 0, %v685
        %v687 = vrot.slane %v683, %v686
        %v688 = vmul.f32 %v645, %v687
        %v689 = vmul.f32 %v650, %v687
        %v690 = vmul.f32 %v655, %v687
        %v691 = vmul.f32 %v660, %v687
        %v692 = vmul.f32 %v665, %v687
        %v693 = vmul.f32 %v670, %v687
        %v694 = vmul.f32 %v675, %v687
        %v695 = vmul.f32 %v680, %v687
        %v696 = vlaneseq
        %v697 = vshrl.u32 %v696, 7
        %v698 = vsub.s32 1, %v697
        %v699 = vrot.slane %v683, %v698
        %v700 = vadd.f32 %v688, %v699
        %v701 = vadd.f32 %v689, %v699
        %v702 = vadd.f32 %v690, %v699
        %v703 = vadd.f32 %v691, %v699
        %v704 = vadd.f32 %v692, %v699
        %v705 = vadd.f32 %v693, %v699
        %v706 = vadd.f32 %v694, %v699
        %v707 = vadd.f32 %v695, %v699
        %v708 = vmax.f32 %v700, 0.0
        %v709 = vmax.f32 %v701, 0.0
        %v710 = vmax.f32 %v702, 0.0
        %v711 = vmax.f32 %v703, 0.0
        %v712 = vmax.f32 %v704, 0.0
        %v713 = vmax.f32 %v705, 0.0
        %v714 = vmax.f32 %v706, 0.0
        %v715 = vmax.f32 %v707, 0.0
        %v716 = vlaneseq
        %v717 = vshrl.u32 %v716, 7
        %vm718 = vcmp.ge.s32.totalorder %v717, 1
        %v719 = vrot.slane %v708, 7
        %v720 = vrot.slane %v709, 7
        %v721 = vrot.slane %v710, 7
        %v722 = vrot.slane %v711, 7
        %v723 = vrot.slane %v712, 7
        %v724 = vrot.slane %v713, 7
        %v725 = vrot.slane %v714, 7
        %v726 = vrot.slane %v715, 7
        %v727 = vsel %vm718, %v719, 0.0
        %v728 = vsel %vm718, %v720, 0.0
        %v729 = vsel %vm718, %v721, 0.0
        %v730 = vsel %vm718, %v722, 0.0
        %v731 = vsel %vm718, %v723, 0.0
        %v732 = vsel %vm718, %v724, 0.0
        %v733 = vsel %vm718, %v725, 0.0
        %v734 = vsel %vm718, %v726, 0.0
        %vm735 = vcmp.lt.s32.totalorder %v717, 7
        %v736 = vrot.slane %v708, 1
        %v737 = vrot.slane %v709, 1
        %v738 = vrot.slane %v710, 1
        %v739 = vrot.slane %v711, 1
        %v740 = vrot.slane %v712, 1
        %v741 = vrot.slane %v713, 1
        %v742 = vrot.slane %v714, 1
        %v743 = vrot.slane %v715, 1
        %v744 = vsel %vm735, %v736, 0.0
        %v745 = vsel %vm735, %v737, 0.0
        %v746 = vsel %vm735, %v738, 0.0
        %v747 = vsel %vm735, %v739, 0.0
        %v748 = vsel %vm735, %v740, 0.0
        %v749 = vsel %vm735, %v741, 0.0
        %v750 = vsel %vm735, %v742, 0.0
        %v751 = vsel %vm735, %v743, 0.0
        %v752 = vmax.f32 %v727, %v744
        %v753 = vmax.f32 %v728, %v745
        %v754 = vmax.f32 %v729, %v746
        %v755 = vmax.f32 %v730, %v747
        %v756 = vmax.f32 %v731, %v748
        %v757 = vmax.f32 %v732, %v749
        %v758 = vmax.f32 %v733, %v750
        %v759 = vmax.f32 %v734, %v751
        %v760 = vmax.f32 %v708, %v752
        %v761 = vmax.f32 %v709, %v753
        %v762 = vmax.f32 %v710, %v754
        %v763 = vmax.f32 %v711, %v755
        %v764 = vmax.f32 %v712, %v756
        %v765 = vmax.f32 %v713, %v757
        %v766 = vmax.f32 %v714, %v758
        %v767 = vmax.f32 %v715, %v759
        %v768 = vmax.f32 %v761, 0.0
        %v769 = vmax.f32 %v760, %v762
        %v770 = vmax.f32 %v761, %v763
        %v771 = vmax.f32 %v762, %v764
        %v772 = vmax.f32 %v763, %v765
        %v773 = vmax.f32 %v764, %v766
        %v774 = vmax.f32 %v765, %v767
        %v775 = vmax.f32 %v766, 0.0
        %v776 = vmax.f32 %v760, %v768
        %v777 = vmax.f32 %v761, %v769
        %v778 = vmax.f32 %v762, %v770
        %v779 = vmax.f32 %v763, %v771
        %v780 = vmax.f32 %v764, %v772
        %v781 = vmax.f32 %v765, %v773
        %v782 = vmax.f32 %v766, %v774
        %v783 = vmax.f32 %v767, %v775
        %792 = vrot.lane.b32.xlu0 %v645, 96
        %v793 = vpop.permute.xlu0 %792
        %794 = vrot.lane.b32.xlu0 %v650, 96
        %v795 = vpop.permute.xlu0 %794
        %796 = vrot.lane.b32.xlu0 %v655, 96
        %v797 = vpop.permute.xlu0 %796
        %798 = vrot.lane.b32.xlu0 %v660, 96
        %v799 = vpop.permute.xlu0 %798
        %800 = vrot.lane.b32.xlu0 %v665, 96
        %v801 = vpop.permute.xlu0 %800
        %802 = vrot.lane.b32.xlu0 %v670, 96
        %v803 = vpop.permute.xlu0 %802
        %804 = vrot.lane.b32.xlu0 %v675, 96
        %v805 = vpop.permute.xlu0 %804
        %806 = vrot.lane.b32.xlu0 %v680, 96
        %v807 = vpop.permute.xlu0 %806
        %v816 = vadd.f32 %v776, %v793
        %v817 = vadd.f32 %v777, %v795
        %v818 = vadd.f32 %v778, %v797
        %v819 = vadd.f32 %v779, %v799
        %v820 = vadd.f32 %v780, %v801
        %v821 = vadd.f32 %v781, %v803
        %v822 = vadd.f32 %v782, %v805
        %v823 = vadd.f32 %v783, %v807
        %v824 = vmul.f32 %v816, 0.70710677
        %v825 = vmul.f32 %v817, 0.70710677
        %v826 = vmul.f32 %v818, 0.70710677
        %v827 = vmul.f32 %v819, 0.70710677
        %v828 = vmul.f32 %v820, 0.70710677
        %v829 = vmul.f32 %v821, 0.70710677
        %v830 = vmul.f32 %v822, 0.70710677
        %v831 = vmul.f32 %v823, 0.70710677
        %832 = vst.msk [vmem:[%s197] sm:$0xff] %vm490, %v824
        %833 = vst.msk [vmem:[%s197 + $0x8] sm:$0xff] %vm490, %v825
        %834 = vst.msk [vmem:[%s197 + $0x10] sm:$0xff] %vm490, %v826
        %835 = vst.msk [vmem:[%s197 + $0x18] sm:$0xff] %vm490, %v827
        %836 = vst.msk [vmem:[%s197 + $0x20] sm:$0xff] %vm490, %v828
        %837 = vst.msk [vmem:[%s197 + $0x28] sm:$0xff] %vm490, %v829
        %838 = vst.msk [vmem:[%s197 + $0x30] sm:$0xff] %vm490, %v830
        %839 = vst.msk [vmem:[%s197 + $0x38] sm:$0xff] %vm490, %v831
        %s840 = sand.u32 %s113, 1
        %s841 = scalar_lea.sflag [#allocation3], %s840
        %s842 = sand.u32 %s113, 1
        %s843 = smul.addr %s842, 64
        %s844 = scalar_lea.vmem [#allocation2], %s843
        // Predicated region
        $region33: #{tpu_custom_call.1} parent=31 // pred_check
          %p845 = pneg %p123
        $region34: #{tpu_custom_call.1} parent=31 // pred_check_branch
          %847 = sbr.rel (%p845) target = $region36
        $region35: #{tpu_custom_call.1} parent=31 // pred_region
          %s849 = ssub.s32 1024, 1024
          %850 = vsyncadd %s841, %s849
          %s851 = smul.addr %s22, 8
          %s852 = smul.addr %s21, 64
          %s853 = sadd.s32 %s851, %s852
          %s854 = smul.addr %s853, 128
          %s855 = scalar_lea.hbm %s3, %s854
          %s856 = sshll.u32 %s844, 4
          %s857 = int_to_ptr.vmem [resolvable:$true] %s856
          %862 = dma.vmem_to_hbm [thread:$0]  %s857, 1024, %s855, %s841, 128, 128, 8
        $region36: #{tpu_custom_call.1} parent=31 // pred_fallthru
          _
      $region32: #{tpu_custom_call.1} parent=5 // pred_fallthru
        _
      %p863 = scmp.le.s32.totalorder 2, %s12
      // Predicated region
      $region37: #{tpu_custom_call.1} parent=5 // pred_check
        %p864 = pneg %p863
      $region38: #{tpu_custom_call.1} parent=5 // pred_check_branch
        %866 = sbr.rel (%p864) target = $region40
      $region39: #{tpu_custom_call.1} parent=5 // pred_region
        %s867 = ssub.s32 %s12, 2
        // Predicated region
        $region41: #{tpu_custom_call.1} parent=39 // pred_check
          %p868 = pneg %p129
        $region42: #{tpu_custom_call.1} parent=39 // pred_check_branch
          %870 = sbr.rel (%p868) target = $region44
        $region43: #{tpu_custom_call.1} parent=39 // pred_region
          %s871 = sand.u32 %s114, 1
          %s872 = scalar_lea.sflag [#allocation3], %s871
          %s873 = sand.u32 %s114, 1
          %s874 = smul.addr %s873, 64
          %s875 = scalar_lea.vmem [#allocation2], %s874
          %876 = dma.done %s872, 1024
        $region44: #{tpu_custom_call.1} parent=39 // pred_fallthru
          _
      $region40: #{tpu_custom_call.1} parent=5 // pred_fallthru
        _
    $region6: #{tpu_custom_call.1} parent=1 // loop_footer
      %s16 = sadd.s32 1, %s12
    $region7: #{tpu_custom_call.1} parent=1 // loop_footer_branch
      %11 = sbr.rel target = $region3
    $region8: #{tpu_custom_call.1} parent=1 // loop_exit
      _
    %877 = vsyncpa [#allocation3], 1
    %s878 = scalar_lea.sflag [#allocation3], 1
    %879 = vsyncpa %s878, 1

</llo_original>
